<compile_context>
chip_gen: v6e
topology: v6e:2x2x1
jax: 0.10.0
libtpu: 0.0.40
codegen_flags: <defaults>
</compile_context>

<pallas_src>
import functools

import jax
import jax.numpy as jnp
from jax.experimental import pallas as pl
from jax.experimental.pallas import tpu as pltpu

LENGTH_WEIGHT = 0.5
CONF_WEIGHT = 2.0


def _round_up(x, m):
    return (x + m - 1) // m * m


def _pick_tiles(B, L, itemsize, target_tile_bytes):
    """Choose (tB, tL). tB divides B; tL is a lane-aligned multiple of 128
    (or the full L when L <= 128). Mask tile bytes stay <= target_tile_bytes."""
    tB = B
    if B > 256:
        for t in (256, 128, 64, 32, 16, 8):
            if B % t == 0:
                tB = t
                break
    if L <= 128:
        tL = L  # full-extent last dim is always legal; single L step, no masking
    else:
        budget_l = (target_tile_bytes // max(1, tB * itemsize)) // 128 * 128
        budget_l = max(128, budget_l)
        tL = min(budget_l, 8192, _round_up(L, 128))
    return tB, tL


def _loss_kernel(xt_ref, mask_ref, len_out_ref, bc_out_ref, len_acc,
                 *, seq_len, tile_l, acc_w, tail_mask, conf_weight):
    """Per (b, l) grid step.

    xt_ref:   (tB, 2) f32   [logits | targets]          (resident per B-block)
    mask_ref: (tB, tL) narrow int/bool                   (streamed over L)
    len_out:  (tB, 1) f32   token counts per example
    bc_out:   (tB, 1) f32   base_loss * conf_w per example
    len_acc:  (tB, acc_w) f32 lane-dense running count
    """
    l = pl.program_id(1)
    n_l = pl.num_programs(1)

    @pl.when(l == 0)
    def _init():
        len_acc[...] = jnp.zeros_like(len_acc)

    # Narrow -> f32 cast happens here, in VMEM, on the streamed tile.
    m = mask_ref[...].astype(jnp.float32)                      # (tB, tL)

    if tail_mask:  # static: only generated when L % tL != 0
        col = l * tile_l + jax.lax.broadcasted_iota(jnp.int32, m.shape, 1)
        m = jnp.where(col < seq_len, m, 0.0)

    # Lane-dense accumulation: static, vreg-aligned lane slices + VPU adds only.
    n_slices = tile_l // acc_w
    chunks = [m[:, k * acc_w:(k + 1) * acc_w] for k in range(n_slices)]
    while len(chunks) > 1:  # small static tree reduce
        nxt = [chunks[i] + chunks[i + 1] for i in range(0, len(chunks) - 1, 2)]
        if len(chunks) % 2:
            nxt.append(chunks[-1])
        chunks = nxt
    len_acc[...] += chunks[0]

    @pl.when(l == n_l - 1)
    def _finalize():
        # Single cross-lane reduce per B-block (not per streamed tile).
        lengths = jnp.sum(len_acc[...], axis=1, keepdims=True)   # (tB, 1)

        x = xt_ref[:, 0:1]                                       # logits  (tB, 1)
        t = xt_ref[:, 1:2]                                       # targets (tB, 1)

        # Shared transcendental: e = exp(-|x|).
        e = jnp.exp(-jnp.abs(x))
        # BCEWithLogits, reduction='none' (PyTorch-stable form):
        #   max(x, 0) - x*t + log1p(exp(-|x|))
        base_loss = jnp.maximum(x, 0.0) - x * t + jnp.log1p(e)
        # Numerically-stable sigmoid reusing e.
        probs = jnp.where(x >= 0.0, 1.0, e) / (1.0 + e)
        conf_w = 1.0 + conf_weight * jnp.abs(probs - t)

        len_out_ref[...] = lengths
        bc_out_ref[...] = base_loss * conf_w


def sentiment_weighted_loss(logits, targets, attention_mask,
                            length_weight=LENGTH_WEIGHT,
                            confidence_weight=CONF_WEIGHT,
                            target_tile_bytes=4 * 1024 * 1024):
    """logits: [B], targets: [B], attention_mask: [B, L] (bool/int8/int32) -> scalar f32."""
    B = logits.shape[0]
    L = attention_mask.shape[1]

    # One tiny DMA for both per-example vectors.
    xt = jnp.stack(
        [logits.astype(jnp.float32), targets.astype(jnp.float32)], axis=1)  # (B, 2)

    # Mask goes in unchanged (natural narrow dtype); cast happens inside the kernel.
    mask = attention_mask
    itemsize = jnp.dtype(mask.dtype).itemsize

    tB, tL = _pick_tiles(B, L, itemsize, target_tile_bytes)
    n_b = B // tB
    n_l = pl.cdiv(L, tL)
    acc_w = tL if tL < 128 else 128
    tail_mask = (L % tL) != 0

    kernel = functools.partial(
        _loss_kernel,
        seq_len=L, tile_l=tL, acc_w=acc_w, tail_mask=tail_mask,
        conf_weight=float(confidence_weight))

    lengths, bc = pl.pallas_call(
        kernel,
        out_shape=(jax.ShapeDtypeStruct((B, 1), jnp.float32),
                   jax.ShapeDtypeStruct((B, 1), jnp.float32)),
        grid=(n_b, n_l),
        in_specs=[
            pl.BlockSpec((tB, 2), lambda b, l: (b, 0)),    # resident per B-block
            pl.BlockSpec((tB, tL), lambda b, l: (b, l)),   # streamed over L
        ],
        out_specs=(
            pl.BlockSpec((tB, 1), lambda b, l: (b, 0)),
            pl.BlockSpec((tB, 1), lambda b, l: (b, 0)),
        ),
        scratch_shapes=[pltpu.VMEM((tB, acc_w), jnp.float32)],
        compiler_params=pltpu.CompilerParams(
            dimension_semantics=("parallel", "arbitrary"),  # B parallel, L reduction
            vmem_limit_bytes=32 * 1024 * 1024),
    )(xt, mask)

    # O(B) epilogue: global length mean + final weighted mean (matches reference).
    lengths = lengths[:, 0]
    bc = bc[:, 0]
    mean_len = jnp.mean(lengths)  # NOTE: all-empty masks -> NaN, same as reference
    len_w = 1.0 + length_weight * (lengths / mean_len - 1.0)
    return jnp.mean(bc * len_w)


def _reference(logits, targets, attention_mask):
    x = logits.astype(jnp.float32)
    t = targets.astype(jnp.float32)
    base = jnp.maximum(x, 0.0) - x * t + jnp.log1p(jnp.exp(-jnp.abs(x)))
    lengths = attention_mask.astype(jnp.float32).sum(axis=1)
    len_w = 1.0 + LENGTH_WEIGHT * (lengths / lengths.mean() - 1.0)
    conf_w = 1.0 + CONF_WEIGHT * jnp.abs(jax.nn.sigmoid(x) - t)
    return jnp.mean(base * len_w * conf_w)


def _make_inputs(key, B, L, mask_dtype):
    k1, k2, k3 = jax.random.split(key, 3)
    logits = jax.random.normal(k1, (B,), dtype=jnp.float32)
    targets = jax.random.bernoulli(k2, 0.5, (B,)).astype(jnp.float32)
    lens = jax.random.randint(k3, (B,), 1, L + 1)
    mask = (jnp.arange(L)[None, :] < lens[:, None]).astype(mask_dtype)
    return logits, targets, mask


if __name__ == "__main__":
    key = jax.random.PRNGKey(0)
    k_a, k_b, k_c = jax.random.split(key, 3)

    # 1) Tiny case consistent with the module: single full-extent L block, int8 mask.
    logits, targets, mask = _make_inputs(k_a, B=8, L=16, mask_dtype=jnp.int8)
    loss = sentiment_weighted_loss(logits, targets, mask)
    jax.block_until_ready(loss)
    ref = _reference(logits, targets, mask)
    assert jnp.allclose(loss, ref, atol=1e-5, rtol=1e-5), (loss, ref)

    # 2) Lane-aligned L, bool mask passed through untouched.
    logits2, targets2, mask2 = _make_inputs(k_b, B=16, L=256, mask_dtype=jnp.bool_)
    loss2 = sentiment_weighted_loss(logits2, targets2, mask2)
    jax.block_until_ready(loss2)
    ref2 = _reference(logits2, targets2, mask2)
    assert jnp.allclose(loss2, ref2, atol=1e-5, rtol=1e-5), (loss2, ref2)

    # 3) Awkward L (300) + small forced tile budget: exercises the cdiv grid,
    #    multi-step pipelined L reduction and the in-kernel tail mask; int32 mask.
    logits3, targets3, mask3 = _make_inputs(k_c, B=16, L=300, mask_dtype=jnp.int32)
    loss3 = sentiment_weighted_loss(logits3, targets3, mask3,
                                    target_tile_bytes=16 * 128 * 4)
    jax.block_until_ready(loss3)
    ref3 = _reference(logits3, targets3, mask3)
    assert jnp.allclose(loss3, ref3, atol=1e-5, rtol=1e-5), (loss3, ref3)

    print("KERNEL_OK")
</pallas_src>

<mosaic_0001>
module attributes {stable_mosaic.version = 11 : i64} {
  func.func @_loss_kernel(%arg0: i32, %arg1: i32, %arg2: memref<8x2xf32, #tpu.memory_space<vmem>>, %arg3: memref<8x16xi8, #tpu.memory_space<vmem>>, %arg4: memref<8x1xf32, #tpu.memory_space<vmem>>, %arg5: memref<8x1xf32, #tpu.memory_space<vmem>>, %arg6: memref<8x16xf32, #tpu.memory_space<vmem>>) attributes {dimension_semantics = [#tpu.dimension_semantics<parallel>, #tpu.dimension_semantics<arbitrary>], iteration_bounds = array<i64: 1, 1>, scalar_prefetch = 0 : i64, scratch_operands = 1 : i64, tpu.core_type = #tpu.core_type<tc>, window_params = [{transform_indices = @transform_0, window_bounds = array<i64: 8, 2>}, {transform_indices = @transform_1, window_bounds = array<i64: 8, 16>}, {transform_indices = @transform_2, window_bounds = array<i64: 8, 1>}, {transform_indices = @transform_3, window_bounds = array<i64: 8, 1>}]} {
    %c0_i32 = arith.constant 0 : i32
    %0 = arith.cmpi eq, %arg1, %c0_i32 : i32
    %1 = arith.extui %0 : i1 to i32
    %c0_i32_0 = arith.constant 0 : i32
    %2 = arith.cmpi ne, %1, %c0_i32_0 : i32
    scf.if %2 {
      %cst = arith.constant 0.000000e+00 : f32
      %11 = vector.broadcast %cst : f32 to vector<8x16xf32>
      %c0_8 = arith.constant 0 : index
      %c0_9 = arith.constant 0 : index
      %12 = vector.load %arg6[%c0_8, %c0_9] : memref<8x16xf32, #tpu.memory_space<vmem>>, vector<8x16xf32>
      tpu.vector_store %arg6[%c0_8, %c0_9], %11 {strides = array<i32>} : memref<8x16xf32, #tpu.memory_space<vmem>>, vector<8x16xf32>,
    } else {
    }
    %c0 = arith.constant 0 : index
    %c0_1 = arith.constant 0 : index
    %3 = vector.load %arg3[%c0, %c0_1] : memref<8x16xi8, #tpu.memory_space<vmem>>, vector<8x16xi8>
    %4 = arith.sitofp %3 : vector<8x16xi8> to vector<8x16xf32>
    %c0_2 = arith.constant 0 : index
    %c0_3 = arith.constant 0 : index
    %5 = vector.load %arg6[%c0_2, %c0_3] : memref<8x16xf32, #tpu.memory_space<vmem>>, vector<8x16xf32>
    %6 = arith.addf %5, %4 : vector<8x16xf32>
    %c0_4 = arith.constant 0 : index
    %c0_5 = arith.constant 0 : index
    %7 = vector.load %arg6[%c0_4, %c0_5] : memref<8x16xf32, #tpu.memory_space<vmem>>, vector<8x16xf32>
    tpu.vector_store %arg6[%c0_4, %c0_5], %6 {strides = array<i32>} : memref<8x16xf32, #tpu.memory_space<vmem>>, vector<8x16xf32>,
    %c0_i32_6 = arith.constant 0 : i32
    %8 = arith.cmpi eq, %arg1, %c0_i32_6 : i32
    %9 = arith.extui %8 : i1 to i32
    %c0_i32_7 = arith.constant 0 : i32
    %10 = arith.cmpi ne, %9, %c0_i32_7 : i32
    scf.if %10 {
      %c0_8 = arith.constant 0 : index
      %c0_9 = arith.constant 0 : index
      %11 = vector.load %arg6[%c0_8, %c0_9] : memref<8x16xf32, #tpu.memory_space<vmem>>, vector<8x16xf32>
      %cst = arith.constant dense<0.000000e+00> : vector<8xf32>
      %12 = vector.multi_reduction <add>, %11, %cst [1] : vector<8x16xf32> to vector<8xf32>
      %13 = vector.shape_cast %12 : vector<8xf32> to vector<8x1xf32>
      %c0_10 = arith.constant 0 : index
      %c0_11 = arith.constant 0 : index
      %14 = vector.load %arg2[%c0_10, %c0_11] : memref<8x2xf32, #tpu.memory_space<vmem>>, vector<8x1xf32>
      %c0_12 = arith.constant 0 : index
      %c1 = arith.constant 1 : index
      %15 = vector.load %arg2[%c0_12, %c1] : memref<8x2xf32, #tpu.memory_space<vmem>>, vector<8x1xf32>
      %16 = math.absf %14 : vector<8x1xf32>
      %cst_13 = arith.constant 0.000000e+00 : f32
      %17 = vector.broadcast %cst_13 : f32 to vector<8x1xf32>
      %18 = arith.subf %17, %16 : vector<8x1xf32>
      %19 = math.exp %18 : vector<8x1xf32>
      %cst_14 = arith.constant 0.000000e+00 : f32
      %20 = vector.broadcast %cst_14 : f32 to vector<8x1xf32>
      %21 = arith.maximumf %14, %20 : vector<8x1xf32>
      %22 = arith.mulf %14, %15 : vector<8x1xf32>
      %23 = arith.subf %21, %22 : vector<8x1xf32>
      %24 = math.log1p %19 : vector<8x1xf32>
      %25 = arith.addf %23, %24 : vector<8x1xf32>
      %cst_15 = arith.constant 0.000000e+00 : f32
      %26 = vector.broadcast %cst_15 : f32 to vector<8x1xf32>
      %27 = arith.cmpf oge, %14, %26 : vector<8x1xf32>
      %cst_16 = arith.constant 1.000000e+00 : f32
      %28 = vector.broadcast %cst_16 : f32 to vector<8x1xf32>
      %29 = arith.select %27, %28, %19 : vector<8x1xi1>, vector<8x1xf32>
      %cst_17 = arith.constant 1.000000e+00 : f32
      %30 = vector.broadcast %cst_17 : f32 to vector<8x1xf32>
      %31 = arith.addf %30, %19 : vector<8x1xf32>
      %32 = arith.divf %29, %31 : vector<8x1xf32>
      %33 = arith.subf %32, %15 : vector<8x1xf32>
      %34 = math.absf %33 : vector<8x1xf32>
      %cst_18 = arith.constant 2.000000e+00 : f32
      %35 = vector.broadcast %cst_18 : f32 to vector<8x1xf32>
      %36 = arith.mulf %35, %34 : vector<8x1xf32>
      %cst_19 = arith.constant 1.000000e+00 : f32
      %37 = vector.broadcast %cst_19 : f32 to vector<8x1xf32>
      %38 = arith.addf %37, %36 : vector<8x1xf32>
      %c0_20 = arith.constant 0 : index
      %c0_21 = arith.constant 0 : index
      %39 = vector.load %arg4[%c0_20, %c0_21] : memref<8x1xf32, #tpu.memory_space<vmem>>, vector<8x1xf32>
      tpu.vector_store %arg4[%c0_20, %c0_21], %13 {strides = array<i32>} : memref<8x1xf32, #tpu.memory_space<vmem>>, vector<8x1xf32>,
      %40 = arith.mulf %25, %38 : vector<8x1xf32>
      %c0_22 = arith.constant 0 : index
      %c0_23 = arith.constant 0 : index
      %41 = vector.load %arg5[%c0_22, %c0_23] : memref<8x1xf32, #tpu.memory_space<vmem>>, vector<8x1xf32>
      tpu.vector_store %arg5[%c0_22, %c0_23], %40 {strides = array<i32>} : memref<8x1xf32, #tpu.memory_space<vmem>>, vector<8x1xf32>,
    } else {
    }
    return
  }
  func.func @transform_0(%arg0: i32, %arg1: i32) -> (i32, i32) {
    %c0_i32 = arith.constant 0 : i32
    %c0_i32_0 = arith.constant 0 : i32
    return %arg0, %c0_i32 : i32, i32
  }
  func.func @transform_1(%arg0: i32, %arg1: i32) -> (i32, i32) {
    %c0_i32 = arith.constant 0 : i32
    return %arg0, %arg1 : i32, i32
  }
  func.func @transform_2(%arg0: i32, %arg1: i32) -> (i32, i32) {
    %c0_i32 = arith.constant 0 : i32
    %c0_i32_0 = arith.constant 0 : i32
    return %arg0, %c0_i32 : i32, i32
  }
  func.func @transform_3(%arg0: i32, %arg1: i32) -> (i32, i32) {
    %c0_i32 = arith.constant 0 : i32
    %c0_i32_0 = arith.constant 0 : i32
    return %arg0, %c0_i32 : i32, i32
  }
}

</mosaic_0001>

<llo_original>
// kernel: tpu_custom_call.1
$region0: #{tpu_custom_call.1}
  #allocation0 [shape = 'u32[]', space=smem, size = 0x4, offset = 0x4, fixed_abs, tag = 'smem constant byte address 0x4 - core index']
  #allocation1 [shape = 'u32[144,128]{1,0:T(1,128)}', space=vmem, size = 0x12000, scoped, tag = 'internal scratch']
  #allocation2 [shape = 'f32[8,16]{1,0:T(8,128)}', space=vmem, size = 0x1000, scoped, tag = 'scratch operand']
  %s0 = inlined_call_operand.vmem [shape: f32[8,2], index: 0, kind: input, shape index: {}]
  %s1 = inlined_call_operand.vmem [shape: s8[8,16], index: 1, kind: input, shape index: {}]
  %s2 = inlined_call_operand.vmem [shape: f32[8,1], index: 2, kind: output, shape index: {0}]
  %s3 = inlined_call_operand.vmem [shape: f32[8,1], index: 3, kind: output, shape index: {1}]
  %4 = xla_tuple %s2, %s3
  %s5 = sld [smem:[#allocation0]]
  $region34: #{tpu_custom_call.1} parent=0
    _
  %s7 = ssub.s32 1, %s5
  %s8 = scalar_select 0, %s7, %s5
  // Predicated region
  $region2: #{tpu_custom_call.1} parent=0 // pred_check
    _
  $region3: #{tpu_custom_call.1} parent=0 // pred_check_branch
    %10 = sbr.rel (0) target = $region5
  $region4: #{tpu_custom_call.1} parent=0 // pred_region
    _
  $region5: #{tpu_custom_call.1} parent=0 // pred_fallthru
    _
  // Predicated region
  $region6: #{tpu_custom_call.1} parent=0 // pred_check
    _
  $region7: #{tpu_custom_call.1} parent=0 // pred_check_branch
    %12 = sbr.rel (0) target = $region9
  $region8: #{tpu_custom_call.1} parent=0 // pred_region
    _
  $region9: #{tpu_custom_call.1} parent=0 // pred_fallthru
    _
  %p13 = scmp.eq.s32.totalorder 0, 0
  // Predicated region
  $region10: #{tpu_custom_call.1} parent=0 // pred_check
    %p14 = pneg %p13
  $region11: #{tpu_custom_call.1} parent=0 // pred_check_branch
    %16 = sbr.rel (%p14) target = $region13
  $region12: #{tpu_custom_call.1} parent=0 // pred_region
    %vm17 = vcmask 130048
    %18 = vst.msk [vmem:[#allocation2] sm:$0xff] %vm17, 0.0
  $region13: #{tpu_custom_call.1} parent=0 // pred_fallthru
    _
  %v19 = vld [vmem:[%s1] sm:$0x3]
  %v20 = vunpack.c.0.s8 %v19
  %v21 = vcvt.s32.f32 %v20
  %v22 = vld [vmem:[#allocation2] sm:$0xff]
  %v23 = vadd.f32 %v22, %v21
  %vm24 = vcmask 130048
  %25 = vst.msk [vmem:[#allocation2] sm:$0xff] %vm24, %v23
  // Predicated region
  $region14: #{tpu_custom_call.1} parent=0 // pred_check
    %p26 = pneg %p13
  $region15: #{tpu_custom_call.1} parent=0 // pred_check_branch
    %28 = sbr.rel (%p26) target = $region17
  $region16: #{tpu_custom_call.1} parent=0 // pred_region
    %v29 = vld [vmem:[#allocation2] sm:$0xff]
    %v30 = vsel %vm24, %v29, 0.0
    %31 = vadd.xlane.f32.xlu0 %v30
    %v32 = vpop.xlane.xlu0 %31
    %v33 = vld [vmem:[%s0] sm:$0xff]
    %v34 = vand.u32 2147483647, %v33
    %v35 = vsub.f32 0.0, %v34
    %v36 = vmul.f32 %v35, 1.442695
    %v37 = vpow.pop %v36
    %v38 = vmax.f32 %v33, 0.0
    %40 = vrot.lane.b32.xlu0 %v33, 127
    %v41 = vpop.permute.xlu0 %40
    %v43 = vmul.f32 %v33, %v41
    %v44 = vsub.f32 %v38, %v43
    %v45 = vadd.f32 %v37, 1.0
    %v46 = vlog2.pop %v45
    %v47 = vmul.f32 %v46, 0.6931472
    %v48 = vmul.f32 -0.5, %v37
    %v49 = vadd.f32 %v48, 1.0
    %v50 = vmul.f32 %v49, %v37
    %v51 = vand.u32 2147483647, %v37
    %vm52 = vcmp.lt.f32.partialorder %v51, 0.0004427343
    %v53 = vsel %vm52, %v50, %v47
    %v54 = vadd.f32 %v44, %v53
    %vm55 = vcmp.ge.f32.partialorder %v33, 0.0
    %v56 = vsel %vm55, 1.0, %v37
    %v57 = vadd.f32 %v37, 1.0
    %v58 = vrcp.pop %v57
    %v59 = vmul.f32 %v56, %v58
    %v60 = vsub.f32 %v59, %v41
    %v61 = vand.u32 2147483647, %v60
    %v62 = vmul.f32 %v61, 2.0
    %v63 = vadd.f32 %v62, 1.0
    %vm64 = vcmask 7168
    %65 = vst.msk [vmem:[%s2] sm:$0xff] %vm64, %v32
    %v66 = vmul.f32 %v54, %v63
    %67 = vst.msk [vmem:[%s3] sm:$0xff] %vm64, %v66
  $region17: #{tpu_custom_call.1} parent=0 // pred_fallthru
    _
  // Predicated region
  $region18: #{tpu_custom_call.1} parent=0 // pred_check
    _
  $region19: #{tpu_custom_call.1} parent=0 // pred_check_branch
    %69 = sbr.rel (0) target = $region21
  $region20: #{tpu_custom_call.1} parent=0 // pred_region
    _
  $region21: #{tpu_custom_call.1} parent=0 // pred_fallthru
    _
  // Predicated region
  $region22: #{tpu_custom_call.1} parent=0 // pred_check
    _
  $region23: #{tpu_custom_call.1} parent=0 // pred_check_branch
    %71 = sbr.rel (0) target = $region25
  $region24: #{tpu_custom_call.1} parent=0 // pred_region
    _
  $region25: #{tpu_custom_call.1} parent=0 // pred_fallthru
    _
  // Predicated region
  $region26: #{tpu_custom_call.1} parent=0 // pred_check
    _
  $region27: #{tpu_custom_call.1} parent=0 // pred_check_branch
    %73 = sbr.rel (0) target = $region29
  $region28: #{tpu_custom_call.1} parent=0 // pred_region
    _
  $region29: #{tpu_custom_call.1} parent=0 // pred_fallthru
    _
  // Predicated region
  $region30: #{tpu_custom_call.1} parent=0 // pred_check
    _
  $region31: #{tpu_custom_call.1} parent=0 // pred_check_branch
    %75 = sbr.rel (0) target = $region33
  $region32: #{tpu_custom_call.1} parent=0 // pred_region
    _
  $region33: #{tpu_custom_call.1} parent=0 // pred_fallthru
    _

</llo_original>
